<compile_context>
chip_gen: v7x
topology: tpu7x:2x2x1
jax: 0.10.0
libtpu: 0.0.40
codegen_flags: <defaults>
</compile_context>

<pallas_src>
import jax
import jax.numpy as jnp
from jax.experimental import pallas as pl
from jax.experimental.pallas import tpu as pltpu


def cbow_kernel(x_ref, w1_ref, b1_ref, w2_ref, b2_ref, out_ref):
    # x_ref : (BM, C, V) bf16    w1_ref: (V, E) bf16    b1_ref: (1, E) f32
    # w2_ref: (E, V) bf16        b2_ref: (1, V) f32     out_ref: (BM, V) f32

    # Mean-fold: average the contexts first, accumulating in f32.
    xbar = jnp.mean(x_ref[...].astype(jnp.float32), axis=1)          # (BM, V)

    # hidden = mean(x) @ W1^T + b1   (W1 stored pre-transposed as (V, E))
    h = jnp.dot(xbar.astype(w1_ref.dtype), w1_ref[...],
                preferred_element_type=jnp.float32) + b1_ref[...]    # (BM, E)

    # out = hidden @ W2^T + b2       (W2 stored pre-transposed as (E, V))
    out = jnp.dot(h.astype(w2_ref.dtype), w2_ref[...],
                  preferred_element_type=jnp.float32) + b2_ref[...]  # (BM, V)

    out_ref[...] = out.astype(out_ref.dtype)


def _round_up(n, m):
    return (n + m - 1) // m * m


def _cbow_call(xb, w1t, b1, w2t, b2, *, block_b=128):
    """xb: (B, C, V); w1t: (V, E); b1: (E,); w2t: (E, V); b2: (V,) -> (B, V)."""
    B, C, V = xb.shape
    E = w1t.shape[1]

    # Batch tile: at least sublane-full (8), at most one MXU's worth (128).
    BM = min(block_b, _round_up(B, 8))
    Bp = _round_up(B, BM)
    if Bp != B:
        xb = jnp.pad(xb, ((0, Bp - B), (0, 0), (0, 0)))

    out = pl.pallas_call(
        cbow_kernel,
        out_shape=jax.ShapeDtypeStruct((Bp, V), jnp.float32),
        grid=(Bp // BM,),
        in_specs=[
            pl.BlockSpec((BM, C, V), lambda i: (i, 0, 0)),   # x tile
            pl.BlockSpec((V, E), lambda i: (0, 0)),          # W1 (pre-T)
            pl.BlockSpec((1, E), lambda i: (0, 0)),          # b1
            pl.BlockSpec((E, V), lambda i: (0, 0)),          # W2 (pre-T)
            pl.BlockSpec((1, V), lambda i: (0, 0)),          # b2
        ],
        out_specs=pl.BlockSpec((BM, V), lambda i: (i, 0)),
        compiler_params=pltpu.CompilerParams(
            dimension_semantics=("parallel",)),              # megacore on v7x
    )(xb,
      w1t,
      b1.reshape(1, E).astype(jnp.float32),
      w2t,
      b2.reshape(1, V).astype(jnp.float32))

    return out[:B]


def cbow_forward(x, w1t, b1, w2t, b2):
    """Module-equivalent forward: x (C, V) -> (1, V) via the batched path."""
    return _cbow_call(x[None], w1t, b1, w2t, b2)


def cbow_forward_batched(xb, w1t, b1, w2t, b2):
    """Amortized forward: xb (B, C, V) -> (B, V), one pallas_call for all B."""
    return _cbow_call(xb, w1t, b1, w2t, b2)


def cbow_reference(x, w1, b1, w2, b2):
    """Pure-JAX f32 reference in the original PyTorch weight layouts."""
    emb = x @ w1.T + b1
    mean = jnp.mean(emb, axis=0)
    return mean[None, :] @ w2.T + b2


if __name__ == "__main__":
    # TPU-tile-friendly shapes consistent with the module:
    #   vocab_size = 256, embedding_dim = 128, context length = 8.
    # Batch 256 -> two 128-row MXU-filling tiles (grid=(2,), "parallel").
    VOCAB, EMB, CTX, BATCH = 256, 128, 8, 256

    key = jax.random.PRNGKey(0)
    kx, k1, k2, k3, k4 = jax.random.split(key, 5)

    # Data pipeline emits bf16 activations directly (halves the dominant HBM
    # operand; NOT a per-call wrapper cast).
    xb = jax.random.normal(
        kx, (BATCH, CTX, VOCAB), dtype=jnp.float32).astype(jnp.bfloat16)
    x = xb[0]
    xb_f32 = xb.astype(jnp.float32)   # what the kernel semantically sees

    # Deterministic parameter init (mimics nn.Linear uniform init scale),
    # kept in the original PyTorch layouts for the reference.
    w1_f32 = jax.random.uniform(k1, (EMB, VOCAB), jnp.float32,
                                -1.0 / VOCAB ** 0.5, 1.0 / VOCAB ** 0.5)
    b1 = jax.random.uniform(k2, (EMB,), jnp.float32,
                            -1.0 / VOCAB ** 0.5, 1.0 / VOCAB ** 0.5)
    w2_f32 = jax.random.uniform(k3, (VOCAB, EMB), jnp.float32,
                                -1.0 / EMB ** 0.5, 1.0 / EMB ** 0.5)
    b2 = jax.random.uniform(k4, (VOCAB,), jnp.float32,
                            -1.0 / EMB ** 0.5, 1.0 / EMB ** 0.5)

    # Parameter storage format: bf16, PRE-TRANSPOSED once at init so both
    # in-kernel dots are plain (M,K)@(K,N) contractions (no per-call relayout).
    w1t = w1_f32.T.astype(jnp.bfloat16)   # (V, E)
    w2t = w2_f32.T.astype(jnp.bfloat16)   # (E, V)

    # Module-equivalent single-example forward (padded to a sublane-full tile).
    out = cbow_forward(x, w1t, b1, w2t, b2)
    jax.block_until_ready(out)
    ref = cbow_reference(xb_f32[0], w1_f32, b1, w2_f32, b2)
    assert out.shape == (1, VOCAB), out.shape
    # bf16 activations + bf16 weights with f32 accumulation vs pure-f32 ref.
    assert jnp.allclose(out, ref, atol=3e-2, rtol=3e-2), "single-example mismatch"

    # Batched forward: MXU M dimension filled (128 rows/tile), weight DMA and
    # per-call overhead amortized, (128, V) lane-dense output slabs.
    out_b = cbow_forward_batched(xb, w1t, b1, w2t, b2)
    jax.block_until_ready(out_b)
    ref_b = jax.vmap(
        lambda xi: cbow_reference(xi, w1_f32, b1, w2_f32, b2)[0])(xb_f32)
    assert out_b.shape == (BATCH, VOCAB), out_b.shape
    assert jnp.allclose(out_b, ref_b, atol=3e-2, rtol=3e-2), "batched mismatch"

    print("KERNEL_OK")
</pallas_src>

<mosaic_0001>
module attributes {stable_mosaic.version = 11 : i64} {
  func.func @cbow_kernel(%arg0: i32, %arg1: memref<8x8x256xbf16, #tpu.memory_space<vmem>>, %arg2: memref<256x128xbf16, #tpu.memory_space<vmem>>, %arg3: memref<1x128xf32, #tpu.memory_space<vmem>>, %arg4: memref<128x256xbf16, #tpu.memory_space<vmem>>, %arg5: memref<1x256xf32, #tpu.memory_space<vmem>>, %arg6: memref<8x256xf32, #tpu.memory_space<vmem>>) attributes {dimension_semantics = [#tpu.dimension_semantics<parallel>], iteration_bounds = array<i64: 1>, scalar_prefetch = 0 : i64, scratch_operands = 0 : i64, tpu.core_type = #tpu.core_type<tc>, window_params = [{transform_indices = @transform_0, window_bounds = array<i64: 8, 8, 256>}, {pipeline_mode = #tpu.pipeline_mode<synchronous>, transform_indices = @transform_1, window_bounds = array<i64: 256, 128>}, {pipeline_mode = #tpu.pipeline_mode<synchronous>, transform_indices = @transform_2, window_bounds = array<i64: 1, 128>}, {pipeline_mode = #tpu.pipeline_mode<synchronous>, transform_indices = @transform_3, window_bounds = array<i64: 128, 256>}, {pipeline_mode = #tpu.pipeline_mode<synchronous>, transform_indices = @transform_4, window_bounds = array<i64: 1, 256>}, {transform_indices = @transform_5, window_bounds = array<i64: 8, 256>}]} {
    %c0 = arith.constant 0 : index
    %c0_0 = arith.constant 0 : index
    %c0_1 = arith.constant 0 : index
    %0 = vector.load %arg1[%c0, %c0_0, %c0_1] : memref<8x8x256xbf16, #tpu.memory_space<vmem>>, vector<8x8x256xbf16>
    %1 = arith.extf %0 : vector<8x8x256xbf16> to vector<8x8x256xf32>
    %cst = arith.constant dense<0.000000e+00> : vector<8x256xf32>
    %2 = vector.multi_reduction <add>, %1, %cst [1] : vector<8x8x256xf32> to vector<8x256xf32>
    %cst_2 = arith.constant 8.000000e+00 : f32
    %3 = vector.broadcast %cst_2 : f32 to vector<8x256xf32>
    %4 = arith.divf %2, %3 : vector<8x256xf32>
    %5 = arith.truncf %4 : vector<8x256xf32> to vector<8x256xbf16>
    %c0_3 = arith.constant 0 : index
    %c0_4 = arith.constant 0 : index
    %6 = vector.load %arg2[%c0_3, %c0_4] : memref<256x128xbf16, #tpu.memory_space<vmem>>, vector<256x128xbf16>
    %cst_5 = arith.constant dense<0.000000e+00> : vector<8x128xf32>
    %7 = tpu.matmul %5, %6, %cst_5 {dimension_numbers = #tpu.dot_dimension_numbers<[1], [0], [0], [1], [0, 0, 1, 1], [], []>} : vector<8x256xbf16>, vector<256x128xbf16>, vector<8x128xf32> -> vector<8x128xf32>
    %c0_6 = arith.constant 0 : index
    %c0_7 = arith.constant 0 : index
    %8 = vector.load %arg3[%c0_6, %c0_7] : memref<1x128xf32, #tpu.memory_space<vmem>>, vector<1x128xf32>
    %9 = vector.broadcast %8 : vector<1x128xf32> to vector<8x128xf32>
    %10 = arith.addf %7, %9 : vector<8x128xf32>
    %11 = arith.truncf %10 : vector<8x128xf32> to vector<8x128xbf16>
    %c0_8 = arith.constant 0 : index
    %c0_9 = arith.constant 0 : index
    %12 = vector.load %arg4[%c0_8, %c0_9] : memref<128x256xbf16, #tpu.memory_space<vmem>>, vector<128x256xbf16>
    %cst_10 = arith.constant dense<0.000000e+00> : vector<8x256xf32>
    %13 = tpu.matmul %11, %12, %cst_10 {dimension_numbers = #tpu.dot_dimension_numbers<[1], [0], [0], [1], [0, 0, 1, 1], [], []>} : vector<8x128xbf16>, vector<128x256xbf16>, vector<8x256xf32> -> vector<8x256xf32>
    %c0_11 = arith.constant 0 : index
    %c0_12 = arith.constant 0 : index
    %14 = vector.load %arg5[%c0_11, %c0_12] : memref<1x256xf32, #tpu.memory_space<vmem>>, vector<1x256xf32>
    %15 = vector.broadcast %14 : vector<1x256xf32> to vector<8x256xf32>
    %16 = arith.addf %13, %15 : vector<8x256xf32>
    %c0_13 = arith.constant 0 : index
    %c0_14 = arith.constant 0 : index
    %17 = vector.load %arg6[%c0_13, %c0_14] : memref<8x256xf32, #tpu.memory_space<vmem>>, vector<8x256xf32>
    tpu.vector_store %arg6[%c0_13, %c0_14], %16 {strides = array<i32>} : memref<8x256xf32, #tpu.memory_space<vmem>>, vector<8x256xf32>,
    return
  }
  func.func @transform_0(%arg0: i32) -> (i32, i32, i32) {
    %c0_i32 = arith.constant 0 : i32
    %c0_i32_0 = arith.constant 0 : i32
    %c0_i32_1 = arith.constant 0 : i32
    return %arg0, %c0_i32, %c0_i32_0 : i32, i32, i32
  }
  func.func @transform_1(%arg0: i32) -> (i32, i32) {
    %c0_i32 = arith.constant 0 : i32
    %c0_i32_0 = arith.constant 0 : i32
    %c0_i32_1 = arith.constant 0 : i32
    return %c0_i32, %c0_i32_0 : i32, i32
  }
  func.func @transform_2(%arg0: i32) -> (i32, i32) {
    %c0_i32 = arith.constant 0 : i32
    %c0_i32_0 = arith.constant 0 : i32
    %c0_i32_1 = arith.constant 0 : i32
    return %c0_i32, %c0_i32_0 : i32, i32
  }
  func.func @transform_3(%arg0: i32) -> (i32, i32) {
    %c0_i32 = arith.constant 0 : i32
    %c0_i32_0 = arith.constant 0 : i32
    %c0_i32_1 = arith.constant 0 : i32
    return %c0_i32, %c0_i32_0 : i32, i32
  }
  func.func @transform_4(%arg0: i32) -> (i32, i32) {
    %c0_i32 = arith.constant 0 : i32
    %c0_i32_0 = arith.constant 0 : i32
    %c0_i32_1 = arith.constant 0 : i32
    return %c0_i32, %c0_i32_0 : i32, i32
  }
  func.func @transform_5(%arg0: i32) -> (i32, i32) {
    %c0_i32 = arith.constant 0 : i32
    %c0_i32_0 = arith.constant 0 : i32
    return %arg0, %c0_i32 : i32, i32
  }
}

</mosaic_0001>

<llo_original>
// kernel: tpu_custom_call.1
$region0: #{tpu_custom_call.1}
  #allocation0 [shape = 'u32[]', space=smem, size = 0x4, offset = 0x4, fixed_abs, tag = 'smem constant byte address 0x4 - core index']
  #allocation1 [shape = 'u32[144,128]{1,0:T(1,128)}', space=vmem, size = 0x12000, scoped, tag = 'internal scratch']
  %s0 = inlined_call_operand.hbm [shape: bf16[8,8,256], index: 0, kind: input, shape index: {}]
  %s1 = inlined_call_operand.hbm [shape: bf16[256,128], index: 1, kind: input, shape index: {}]
  %s2 = inlined_call_operand.vmem [shape: f32[1,128], index: 2, kind: input, shape index: {}]
  %s3 = inlined_call_operand.hbm [shape: bf16[128,256], index: 3, kind: input, shape index: {}]
  %s4 = inlined_call_operand.vmem [shape: f32[1,256], index: 4, kind: input, shape index: {}]
  %s5 = inlined_call_operand.hbm [shape: f32[8,256], index: 5, kind: output, shape index: {}]
  %s6 = sld [smem:[#allocation0]]
  $region42: #{tpu_custom_call.1} parent=0
    _
  %s8 = ssub.s32 1, %s6
  %s9 = scalar_select 0, %s8, %s6
  $region1: #{tpu_custom_call.1} parent=0
    #allocation2 [shape = 'u8[32768]{0}', space=vmem, size = 0x8000, scoped, tag = 'input window, operand 0, single buffered']
    #allocation3 [shape = 's32[1]{0}', space=sflag, size = 0x4, scoped, tag = 'scoped memory for tpu_custom_call.1']
    #allocation4 [shape = 's32[1]{0}', space=sflag, size = 0x4, scoped, tag = 'scoped memory for tpu_custom_call.1']
    #allocation5 [shape = 'u8[65536]{0}', space=vmem, size = 0x10000, scoped, tag = 'input window, operand 1, single buffered']
    #allocation6 [shape = 's32[1]{0}', space=sflag, size = 0x4, scoped, tag = 'scoped memory for tpu_custom_call.1']
    #allocation7 [shape = 'u8[65536]{0}', space=vmem, size = 0x10000, scoped, tag = 'input window, operand 3, single buffered']
    #allocation8 [shape = 'u8[8192]{0}', space=vmem, size = 0x2000, scoped, tag = 'output window, operand 0, single buffered']
    %10 = vsyncpa [#allocation3], 0
    %11 = vsyncpa [#allocation6], 0
    %12 = vsyncpa [#allocation4], 0
    // Predicated region
    $region2: #{tpu_custom_call.1} parent=1 // pred_check
      _
    $region3: #{tpu_custom_call.1} parent=1 // pred_check_branch
      %14 = sbr.rel (0) target = $region5
    $region4: #{tpu_custom_call.1} parent=1 // pred_region
      %s16 = ssub.s32 1024, 1024
      %17 = vsyncadd [#allocation3], %s16
      %s18 = sshll.u32 [#allocation2], 4
      %s19 = int_to_ptr.vmem [resolvable:$true] %s18
      %24 = dma.hbm_to_vmem [thread:$0]  %s0, 1024, %s19, [#allocation3], 128, 128, 8
    $region5: #{tpu_custom_call.1} parent=1 // pred_fallthru
      _
    // Predicated region
    $region6: #{tpu_custom_call.1} parent=1 // pred_check
      _
    $region7: #{tpu_custom_call.1} parent=1 // pred_check_branch
      %26 = sbr.rel (0) target = $region9
    $region8: #{tpu_custom_call.1} parent=1 // pred_region
      %s28 = ssub.s32 2048, 2048
      %29 = vsyncadd [#allocation6], %s28
      %s30 = sshll.u32 [#allocation5], 4
      %s31 = int_to_ptr.vmem [resolvable:$true] %s30
      %36 = dma.hbm_to_vmem [thread:$0]  %s1, 2048, %s31, [#allocation6], 64, 64, 4
    $region9: #{tpu_custom_call.1} parent=1 // pred_fallthru
      _
    // Predicated region
    $region10: #{tpu_custom_call.1} parent=1 // pred_check
      _
    $region11: #{tpu_custom_call.1} parent=1 // pred_check_branch
      %38 = sbr.rel (0) target = $region13
    $region12: #{tpu_custom_call.1} parent=1 // pred_region
      _
    $region13: #{tpu_custom_call.1} parent=1 // pred_fallthru
      _
    // Predicated region
    $region14: #{tpu_custom_call.1} parent=1 // pred_check
      _
    $region15: #{tpu_custom_call.1} parent=1 // pred_check_branch
      %40 = sbr.rel (0) target = $region17
    $region16: #{tpu_custom_call.1} parent=1 // pred_region
      %s42 = ssub.s32 2048, 2048
      %43 = vsyncadd [#allocation6], %s42
      %s44 = sshll.u32 [#allocation7], 4
      %s45 = int_to_ptr.vmem [resolvable:$true] %s44
      %50 = dma.hbm_to_vmem [thread:$0]  %s3, 2048, %s45, [#allocation6], 128, 128, 8
    $region17: #{tpu_custom_call.1} parent=1 // pred_fallthru
      _
    // Predicated region
    $region18: #{tpu_custom_call.1} parent=1 // pred_check
      _
    $region19: #{tpu_custom_call.1} parent=1 // pred_check_branch
      %52 = sbr.rel (0) target = $region21
    $region20: #{tpu_custom_call.1} parent=1 // pred_region
      _
    $region21: #{tpu_custom_call.1} parent=1 // pred_fallthru
      _
    // Predicated region
    $region22: #{tpu_custom_call.1} parent=1 // pred_check
      _
    $region23: #{tpu_custom_call.1} parent=1 // pred_check_branch
      %54 = sbr.rel (0) target = $region25
    $region24: #{tpu_custom_call.1} parent=1 // pred_region
      %55 = dma.done [#allocation3], 1024
    $region25: #{tpu_custom_call.1} parent=1 // pred_fallthru
      _
    // Predicated region
    $region26: #{tpu_custom_call.1} parent=1 // pred_check
      _
    $region27: #{tpu_custom_call.1} parent=1 // pred_check_branch
      %57 = sbr.rel (0) target = $region29
    $region28: #{tpu_custom_call.1} parent=1 // pred_region
      %58 = dma.done [#allocation6], 2048
    $region29: #{tpu_custom_call.1} parent=1 // pred_fallthru
      _
    // Predicated region
    $region30: #{tpu_custom_call.1} parent=1 // pred_check
      _
    $region31: #{tpu_custom_call.1} parent=1 // pred_check_branch
      %60 = sbr.rel (0) target = $region33
    $region32: #{tpu_custom_call.1} parent=1 // pred_region
      %61 = dma.done [#allocation6], 2048
    $region33: #{tpu_custom_call.1} parent=1 // pred_fallthru
      _
    %v63 = vld [vmem:[#allocation2] sm:$0xff]
    %v64 = vld [vmem:[#allocation2 + $0x8] sm:$0xff]
    %v65 = vld [vmem:[#allocation2 + $0x10] sm:$0xff]
    %v66 = vld [vmem:[#allocation2 + $0x18] sm:$0xff]
    %v67 = vld [vmem:[#allocation2 + $0x20] sm:$0xff]
    %v68 = vld [vmem:[#allocation2 + $0x28] sm:$0xff]
    %v69 = vld [vmem:[#allocation2 + $0x30] sm:$0xff]
    %v70 = vld [vmem:[#allocation2 + $0x38] sm:$0xff]
    %v71 = vunpack.c.l.bf16 %v63
    %v72 = vunpack.c.h.bf16 %v63
    %v73 = vunpack.c.l.bf16 %v64
    %v74 = vunpack.c.h.bf16 %v64
    %v75 = vunpack.c.l.bf16 %v65
    %v76 = vunpack.c.h.bf16 %v65
    %v77 = vunpack.c.l.bf16 %v66
    %v78 = vunpack.c.h.bf16 %v66
    %v79 = vunpack.c.l.bf16 %v67
    %v80 = vunpack.c.h.bf16 %v67
    %v81 = vunpack.c.l.bf16 %v68
    %v82 = vunpack.c.h.bf16 %v68
    %v83 = vunpack.c.l.bf16 %v69
    %v84 = vunpack.c.h.bf16 %v69
    %v85 = vunpack.c.l.bf16 %v70
    %v86 = vunpack.c.h.bf16 %v70
    %v87 = vrot.slane %v71, 4
    %v88 = vadd.f32 %v71, %v87
    %v89 = vrot.slane %v88, 2
    %v90 = vadd.f32 %v88, %v89
    %v91 = vrot.slane %v90, 1
    %v92 = vadd.f32 %v90, %v91
    %v93 = vrot.slane %v72, 4
    %v94 = vadd.f32 %v72, %v93
    %v95 = vrot.slane %v94, 2
    %v96 = vadd.f32 %v94, %v95
    %v97 = vrot.slane %v96, 1
    %v98 = vadd.f32 %v96, %v97
    %v99 = vrot.slane %v73, 4
    %v100 = vadd.f32 %v73, %v99
    %v101 = vrot.slane %v100, 2
    %v102 = vadd.f32 %v100, %v101
    %v103 = vrot.slane %v102, 1
    %v104 = vadd.f32 %v102, %v103
    %v105 = vrot.slane %v74, 4
    %v106 = vadd.f32 %v74, %v105
    %v107 = vrot.slane %v106, 2
    %v108 = vadd.f32 %v106, %v107
    %v109 = vrot.slane %v108, 1
    %v110 = vadd.f32 %v108, %v109
    %v111 = vrot.slane %v75, 4
    %v112 = vadd.f32 %v75, %v111
    %v113 = vrot.slane %v112, 2
    %v114 = vadd.f32 %v112, %v113
    %v115 = vrot.slane %v114, 1
    %v116 = vadd.f32 %v114, %v115
    %v117 = vrot.slane %v76, 4
    %v118 = vadd.f32 %v76, %v117
    %v119 = vrot.slane %v118, 2
    %v120 = vadd.f32 %v118, %v119
    %v121 = vrot.slane %v120, 1
    %v122 = vadd.f32 %v120, %v121
    %v123 = vrot.slane %v77, 4
    %v124 = vadd.f32 %v77, %v123
    %v125 = vrot.slane %v124, 2
    %v126 = vadd.f32 %v124, %v125
    %v127 = vrot.slane %v126, 1
    %v128 = vadd.f32 %v126, %v127
    %v129 = vrot.slane %v78, 4
    %v130 = vadd.f32 %v78, %v129
    %v131 = vrot.slane %v130, 2
    %v132 = vadd.f32 %v130, %v131
    %v133 = vrot.slane %v132, 1
    %v134 = vadd.f32 %v132, %v133
    %v135 = vrot.slane %v79, 4
    %v136 = vadd.f32 %v79, %v135
    %v137 = vrot.slane %v136, 2
    %v138 = vadd.f32 %v136, %v137
    %v139 = vrot.slane %v138, 1
    %v140 = vadd.f32 %v138, %v139
    %v141 = vrot.slane %v80, 4
    %v142 = vadd.f32 %v80, %v141
    %v143 = vrot.slane %v142, 2
    %v144 = vadd.f32 %v142, %v143
    %v145 = vrot.slane %v144, 1
    %v146 = vadd.f32 %v144, %v145
    %v147 = vrot.slane %v81, 4
    %v148 = vadd.f32 %v81, %v147
    %v149 = vrot.slane %v148, 2
    %v150 = vadd.f32 %v148, %v149
    %v151 = vrot.slane %v150, 1
    %v152 = vadd.f32 %v150, %v151
    %v153 = vrot.slane %v82, 4
    %v154 = vadd.f32 %v82, %v153
    %v155 = vrot.slane %v154, 2
    %v156 = vadd.f32 %v154, %v155
    %v157 = vrot.slane %v156, 1
    %v158 = vadd.f32 %v156, %v157
    %v159 = vrot.slane %v83, 4
    %v160 = vadd.f32 %v83, %v159
    %v161 = vrot.slane %v160, 2
    %v162 = vadd.f32 %v160, %v161
    %v163 = vrot.slane %v162, 1
    %v164 = vadd.f32 %v162, %v163
    %v165 = vrot.slane %v84, 4
    %v166 = vadd.f32 %v84, %v165
    %v167 = vrot.slane %v166, 2
    %v168 = vadd.f32 %v166, %v167
    %v169 = vrot.slane %v168, 1
    %v170 = vadd.f32 %v168, %v169
    %v171 = vrot.slane %v85, 4
    %v172 = vadd.f32 %v85, %v171
    %v173 = vrot.slane %v172, 2
    %v174 = vadd.f32 %v172, %v173
    %v175 = vrot.slane %v174, 1
    %v176 = vadd.f32 %v174, %v175
    %v177 = vrot.slane %v86, 4
    %v178 = vadd.f32 %v86, %v177
    %v179 = vrot.slane %v178, 2
    %v180 = vadd.f32 %v178, %v179
    %v181 = vrot.slane %v180, 1
    %v182 = vadd.f32 %v180, %v181
    %v183 = vrcp.pop 8.0
    %v184 = vmul.f32 %v92, %v183
    %v185 = vmul.f32 %v98, %v183
    %v186 = vmul.f32 %v104, %v183
    %v187 = vmul.f32 %v110, %v183
    %v188 = vmul.f32 %v116, %v183
    %v189 = vmul.f32 %v122, %v183
    %v190 = vmul.f32 %v128, %v183
    %v191 = vmul.f32 %v134, %v183
    %v192 = vmul.f32 %v140, %v183
    %v193 = vmul.f32 %v146, %v183
    %v194 = vmul.f32 %v152, %v183
    %v195 = vmul.f32 %v158, %v183
    %v196 = vmul.f32 %v164, %v183
    %v197 = vmul.f32 %v170, %v183
    %v198 = vmul.f32 %v176, %v183
    %v199 = vmul.f32 %v182, %v183
    %v200 = vpack.c.bf16 %v184, %v184
    %v201 = vpack.c.bf16 %v185, %v185
    %v202 = vpack.c.bf16 %v186, %v186
    %v203 = vpack.c.bf16 %v187, %v187
    %v204 = vpack.c.bf16 %v188, %v188
    %v205 = vpack.c.bf16 %v189, %v189
    %v206 = vpack.c.bf16 %v190, %v190
    %v207 = vpack.c.bf16 %v191, %v191
    %v208 = vpack.c.bf16 %v192, %v192
    %v209 = vpack.c.bf16 %v193, %v193
    %v210 = vpack.c.bf16 %v194, %v194
    %v211 = vpack.c.bf16 %v195, %v195
    %v212 = vpack.c.bf16 %v196, %v196
    %v213 = vpack.c.bf16 %v197, %v197
    %v214 = vpack.c.bf16 %v198, %v198
    %v215 = vpack.c.bf16 %v199, %v199
    %v216 = vld [vmem:[#allocation5] sm:$0xf]
    %v217 = vld [vmem:[#allocation5 + $0x4] sm:$0xf]
    %v218 = vld [vmem:[#allocation5 + $0x8] sm:$0xf]
    %v219 = vld [vmem:[#allocation5 + $0xc] sm:$0xf]
    %v220 = vld [vmem:[#allocation5 + $0x10] sm:$0xf]
    %v221 = vld [vmem:[#allocation5 + $0x14] sm:$0xf]
    %v222 = vld [vmem:[#allocation5 + $0x18] sm:$0xf]
    %v223 = vld [vmem:[#allocation5 + $0x1c] sm:$0xf]
    %v224 = vld [vmem:[#allocation5 + $0x20] sm:$0xf]
    %v225 = vld [vmem:[#allocation5 + $0x24] sm:$0xf]
    %v226 = vld [vmem:[#allocation5 + $0x28] sm:$0xf]
    %v227 = vld [vmem:[#allocation5 + $0x2c] sm:$0xf]
    %v228 = vld [vmem:[#allocation5 + $0x30] sm:$0xf]
    %v229 = vld [vmem:[#allocation5 + $0x34] sm:$0xf]
    %v230 = vld [vmem:[#allocation5 + $0x38] sm:$0xf]
    %v231 = vld [vmem:[#allocation5 + $0x3c] sm:$0xf]
    %v232 = vld [vmem:[#allocation5 + $0x40] sm:$0xf]
    %v233 = vld [vmem:[#allocation5 + $0x44] sm:$0xf]
    %v234 = vld [vmem:[#allocation5 + $0x48] sm:$0xf]
    %v235 = vld [vmem:[#allocation5 + $0x4c] sm:$0xf]
    %v236 = vld [vmem:[#allocation5 + $0x50] sm:$0xf]
    %v237 = vld [vmem:[#allocation5 + $0x54] sm:$0xf]
    %v238 = vld [vmem:[#allocation5 + $0x58] sm:$0xf]
    %v239 = vld [vmem:[#allocation5 + $0x5c] sm:$0xf]
    %v240 = vld [vmem:[#allocation5 + $0x60] sm:$0xf]
    %v241 = vld [vmem:[#allocation5 + $0x64] sm:$0xf]
    %v242 = vld [vmem:[#allocation5 + $0x68] sm:$0xf]
    %v243 = vld [vmem:[#allocation5 + $0x6c] sm:$0xf]
    %v244 = vld [vmem:[#allocation5 + $0x70] sm:$0xf]
    %v245 = vld [vmem:[#allocation5 + $0x74] sm:$0xf]
    %v246 = vld [vmem:[#allocation5 + $0x78] sm:$0xf]
    %v247 = vld [vmem:[#allocation5 + $0x7c] sm:$0xf]
    %v248 = vld [vmem:[%s2] sm:$0x1]
    %v250 = vlaneseq
    %v251 = vshrl.u32 %v250, 7
    %v252 = vsub.s32 0, %v251
    %v253 = vrot.slane %v248, %v252
    %v271 = vunpack.c.l.b16 %v200
    %v272 = vunpack.c.l.b16 %v201
    %v273 = vunpack.c.l.b16 %v202
    %v274 = vunpack.c.l.b16 %v203
    %v275 = vunpack.c.l.b16 %v204
    %v276 = vunpack.c.l.b16 %v205
    %v277 = vunpack.c.l.b16 %v206
    %v278 = vunpack.c.l.b16 %v207
    %v279 = vunpack.c.l.b16 %v208
    %v280 = vunpack.c.l.b16 %v209
    %v281 = vunpack.c.l.b16 %v210
    %v282 = vunpack.c.l.b16 %v211
    %v283 = vunpack.c.l.b16 %v212
    %v284 = vunpack.c.l.b16 %v213
    %v285 = vunpack.c.l.b16 %v214
    %v286 = vunpack.c.l.b16 %v215
    %vm287 = vcmask 1041409
    %v288 = vsel %vm287, %v273, %v271
    %vm289 = vcmask 1042434
    %v290 = vsel %vm289, %v275, %v288
    %vm291 = vcmask 1043459
    %v292 = vsel %vm291, %v277, %v290
    %vm293 = vcmask 1044484
    %v294 = vsel %vm293, %v279, %v292
    %vm295 = vcmask 1045509
    %v296 = vsel %vm295, %v281, %v294
    %vm297 = vcmask 1046534
    %v298 = vsel %vm297, %v283, %v296
    %vm299 = vcmask 1047559
    %v300 = vsel %vm299, %v285, %v298
    %v301 = vsel %vm287, %v274, %v272
    %v302 = vsel %vm289, %v276, %v301
    %v303 = vsel %vm291, %v278, %v302
    %v304 = vsel %vm293, %v280, %v303
    %v305 = vsel %vm295, %v282, %v304
    %v306 = vsel %vm297, %v284, %v305
    %v307 = vsel %vm299, %v286, %v306
    %v308 = vpack.c.b16 %v300, %v300
    %v309 = vpack.c.b16 %v307, %v307
    %v344 = vunpack.c.l.b16 %v216
    %v345 = vunpack.c.l.b16 %v217
    %v346 = vunpack.c.l.b16 %v218
    %v347 = vunpack.c.l.b16 %v219
    %v348 = vunpack.c.l.b16 %v220
    %v349 = vunpack.c.l.b16 %v221
    %v350 = vunpack.c.l.b16 %v222
    %v351 = vunpack.c.l.b16 %v223
    %v352 = vunpack.c.l.b16 %v224
    %v353 = vunpack.c.l.b16 %v225
    %v354 = vunpack.c.l.b16 %v226
    %v355 = vunpack.c.l.b16 %v227
    %v356 = vunpack.c.l.b16 %v228
    %v357 = vunpack.c.l.b16 %v229
    %v358 = vunpack.c.l.b16 %v230
    %v359 = vunpack.c.l.b16 %v231
    %v360 = vunpack.c.l.b16 %v232
    %v361 = vunpack.c.l.b16 %v233
    %v362 = vunpack.c.l.b16 %v234
    %v363 = vunpack.c.l.b16 %v235
    %v364 = vunpack.c.l.b16 %v236
    %v365 = vunpack.c.l.b16 %v237
    %v366 = vunpack.c.l.b16 %v238
    %v367 = vunpack.c.l.b16 %v239
    %v368 = vunpack.c.l.b16 %v240
    %v369 = vunpack.c.l.b16 %v241
    %v370 = vunpack.c.l.b16 %v242
    %v371 = vunpack.c.l.b16 %v243
    %v372 = vunpack.c.l.b16 %v244
    %v373 = vunpack.c.l.b16 %v245
    %v374 = vunpack.c.l.b16 %v246
    %v375 = vunpack.c.l.b16 %v247
    %v376 = vpack.c.b16 %v345, %v344
    %v377 = vpack.c.b16 %v347, %v346
    %v378 = vpack.c.b16 %v349, %v348
    %v379 = vpack.c.b16 %v351, %v350
    %v380 = vpack.c.b16 %v353, %v352
    %v381 = vpack.c.b16 %v355, %v354
    %v382 = vpack.c.b16 %v357, %v356
    %v383 = vpack.c.b16 %v359, %v358
    %v384 = vpack.c.b16 %v361, %v360
    %v385 = vpack.c.b16 %v363, %v362
    %v386 = vpack.c.b16 %v365, %v364
    %v387 = vpack.c.b16 %v367, %v366
    %v388 = vpack.c.b16 %v369, %v368
    %v389 = vpack.c.b16 %v371, %v370
    %v390 = vpack.c.b16 %v373, %v372
    %v391 = vpack.c.b16 %v375, %v374
    %408 = vmatprep.subr.bf16.mxu0 0
    %409 = vmatpush1.bf16.msra.mxu0 %v376
    %410 = vmatprep.subr.bf16.mxu0 0
    %411 = vmatpush1.bf16.msra.mxu0 %v377
    %412 = vmatprep.subr.bf16.mxu0 0
    %413 = vmatpush1.bf16.msra.mxu0 %v378
    %414 = vmatprep.subr.bf16.mxu0 0
    %415 = vmatpush1.bf16.msra.mxu0 %v379
    %416 = vmatprep.subr.bf16.mxu0 0
    %417 = vmatpush1.bf16.msra.mxu0 %v380
    %418 = vmatprep.subr.bf16.mxu0 0
    %419 = vmatpush1.bf16.msra.mxu0 %v381
    %420 = vmatprep.subr.bf16.mxu0 0
    %421 = vmatpush1.bf16.msra.mxu0 %v382
    %422 = vmatprep.subr.bf16.mxu0 0
    %423 = vmatpush1.bf16.msra.mxu0 %v383
    %424 = vmatprep.subr.bf16.mxu0 0
    %425 = vmatpush1.bf16.msra.mxu0 %v384
    %426 = vmatprep.subr.bf16.mxu0 0
    %427 = vmatpush1.bf16.msra.mxu0 %v385
    %428 = vmatprep.subr.bf16.mxu0 0
    %429 = vmatpush1.bf16.msra.mxu0 %v386
    %430 = vmatprep.subr.bf16.mxu0 0
    %431 = vmatpush1.bf16.msra.mxu0 %v387
    %432 = vmatprep.subr.bf16.mxu0 0
    %433 = vmatpush1.bf16.msra.mxu0 %v388
    %434 = vmatprep.subr.bf16.mxu0 0
    %435 = vmatpush1.bf16.msra.mxu0 %v389
    %436 = vmatprep.subr.bf16.mxu0 0
    %437 = vmatpush1.bf16.msra.mxu0 %v390
    %438 = vmatprep.subr.bf16.mxu0 0
    %439 = vmatpush1.bf16.msra.mxu0 %v391
    %440 = vmatprep.mubr.bf16.mxu0 %v309
    %441 = vmatmul.mubr.bf16.gmra.mrb[0].mxu0 %v308
    %v442 = vpop.f32.mrb[0].mxu0
    %v443 = vadd.f32 %v253, %v442
    %v444 = vpop.f32.mrb[0].mxu0
    %v445 = vpop.f32.mrb[0].mxu0
    %v446 = vpop.f32.mrb[0].mxu0
    %447 = vdwg.mxu0
    %v448 = vpack.c.bf16 %v443, %v443
    %v449 = vld [vmem:[#allocation7] sm:$0xff]
    %v450 = vld [vmem:[#allocation7 + $0x8] sm:$0xff]
    %v451 = vld [vmem:[#allocation7 + $0x10] sm:$0xff]
    %v452 = vld [vmem:[#allocation7 + $0x18] sm:$0xff]
    %v453 = vld [vmem:[#allocation7 + $0x20] sm:$0xff]
    %v454 = vld [vmem:[#allocation7 + $0x28] sm:$0xff]
    %v455 = vld [vmem:[#allocation7 + $0x30] sm:$0xff]
    %v456 = vld [vmem:[#allocation7 + $0x38] sm:$0xff]
    %v457 = vld [vmem:[#allocation7 + $0x40] sm:$0xff]
    %v458 = vld [vmem:[#allocation7 + $0x48] sm:$0xff]
    %v459 = vld [vmem:[#allocation7 + $0x50] sm:$0xff]
    %v460 = vld [vmem:[#allocation7 + $0x58] sm:$0xff]
    %v461 = vld [vmem:[#allocation7 + $0x60] sm:$0xff]
    %v462 = vld [vmem:[#allocation7 + $0x68] sm:$0xff]
    %v463 = vld [vmem:[#allocation7 + $0x70] sm:$0xff]
    %v464 = vld [vmem:[#allocation7 + $0x78] sm:$0xff]
    %v465 = vld [vmem:[%s4] sm:$0x3]
    %v467 = vlaneseq
    %v468 = vshrl.u32 %v467, 7
    %v469 = vsub.s32 0, %v468
    %v470 = vrot.slane %v465, %v469
    %v471 = vlaneseq
    %v472 = vshrl.u32 %v471, 7
    %v473 = vsub.s32 1, %v472
    %v474 = vrot.slane %v465, %v473
    %v493 = vunpack.c.l.b16 %v449
    %v494 = vunpack.c.h.b16 %v449
    %v495 = vunpack.c.l.b16 %v450
    %v496 = vunpack.c.h.b16 %v450
    %v497 = vunpack.c.l.b16 %v451
    %v498 = vunpack.c.h.b16 %v451
    %v499 = vunpack.c.l.b16 %v452
    %v500 = vunpack.c.h.b16 %v452
    %v501 = vunpack.c.l.b16 %v453
    %v502 = vunpack.c.h.b16 %v453
    %v503 = vunpack.c.l.b16 %v454
    %v504 = vunpack.c.h.b16 %v454
    %v505 = vunpack.c.l.b16 %v455
    %v506 = vunpack.c.h.b16 %v455
    %v507 = vunpack.c.l.b16 %v456
    %v508 = vunpack.c.h.b16 %v456
    %v509 = vunpack.c.l.b16 %v457
    %v510 = vunpack.c.h.b16 %v457
    %v511 = vunpack.c.l.b16 %v458
    %v512 = vunpack.c.h.b16 %v458
    %v513 = vunpack.c.l.b16 %v459
    %v514 = vunpack.c.h.b16 %v459
    %v515 = vunpack.c.l.b16 %v460
    %v516 = vunpack.c.h.b16 %v460
    %v517 = vunpack.c.l.b16 %v461
    %v518 = vunpack.c.h.b16 %v461
    %v519 = vunpack.c.l.b16 %v462
    %v520 = vunpack.c.h.b16 %v462
    %v521 = vunpack.c.l.b16 %v463
    %v522 = vunpack.c.h.b16 %v463
    %v523 = vunpack.c.l.b16 %v464
    %v524 = vunpack.c.h.b16 %v464
    %v525 = vpack.c.b16 %v495, %v493
    %v526 = vpack.c.b16 %v496, %v494
    %v527 = vpack.c.b16 %v499, %v497
    %v528 = vpack.c.b16 %v500, %v498
    %v529 = vpack.c.b16 %v503, %v501
    %v530 = vpack.c.b16 %v504, %v502
    %v531 = vpack.c.b16 %v507, %v505
    %v532 = vpack.c.b16 %v508, %v506
    %v533 = vpack.c.b16 %v511, %v509
    %v534 = vpack.c.b16 %v512, %v510
    %v535 = vpack.c.b16 %v515, %v513
    %v536 = vpack.c.b16 %v516, %v514
    %v537 = vpack.c.b16 %v519, %v517
    %v538 = vpack.c.b16 %v520, %v518
    %v539 = vpack.c.b16 %v523, %v521
    %v540 = vpack.c.b16 %v524, %v522
    %557 = vmatprep.subr.bf16.mxu0 %v526
    %558 = vmatpush1.bf16.msra.mxu0 %v525
    %559 = vmatprep.subr.bf16.mxu0 %v528
    %560 = vmatpush1.bf16.msra.mxu0 %v527
    %561 = vmatprep.subr.bf16.mxu0 %v530
    %562 = vmatpush1.bf16.msra.mxu0 %v529
    %563 = vmatprep.subr.bf16.mxu0 %v532
    %564 = vmatpush1.bf16.msra.mxu0 %v531
    %565 = vmatprep.subr.bf16.mxu0 %v534
    %566 = vmatpush1.bf16.msra.mxu0 %v533
    %567 = vmatprep.subr.bf16.mxu0 %v536
    %568 = vmatpush1.bf16.msra.mxu0 %v535
    %569 = vmatprep.subr.bf16.mxu0 %v538
    %570 = vmatpush1.bf16.msra.mxu0 %v537
    %571 = vmatprep.subr.bf16.mxu0 %v540
    %572 = vmatpush1.bf16.msra.mxu0 %v539
    %573 = vmatprep.subr.bf16.mxu0 0
    %574 = vmatpush1.bf16.msra.mxu0 0
    %575 = vmatprep.subr.bf16.mxu0 0
    %576 = vmatpush1.bf16.msra.mxu0 0
    %577 = vmatprep.subr.bf16.mxu0 0
    %578 = vmatpush1.bf16.msra.mxu0 0
    %579 = vmatprep.subr.bf16.mxu0 0
    %580 = vmatpush1.bf16.msra.mxu0 0
    %581 = vmatprep.subr.bf16.mxu0 0
    %582 = vmatpush1.bf16.msra.mxu0 0
    %583 = vmatprep.subr.bf16.mxu0 0
    %584 = vmatpush1.bf16.msra.mxu0 0
    %585 = vmatprep.subr.bf16.mxu0 0
    %586 = vmatpush1.bf16.msra.mxu0 0
    %587 = vmatprep.subr.bf16.mxu0 0
    %588 = vmatpush1.bf16.msra.mxu0 0
    %589 = vmatprep.mubr.bf16.mxu0 0
    %590 = vmatmul.mubr.bf16.gmra.mrb[0].mxu0 %v448
    %v591 = vpop.f32.mrb[0].mxu0
    %v592 = vadd.f32 %v470, %v591
    %v593 = vpop.f32.mrb[0].mxu0
    %v594 = vadd.f32 %v474, %v593
    %v595 = vpop.f32.mrb[0].mxu0
    %v596 = vpop.f32.mrb[0].mxu0
    %597 = vdwg.mxu0
    %598 = vst [vmem:[#allocation8] sm:$0xff] %v592
    %599 = vst [vmem:[#allocation8 + $0x8] sm:$0xff] %v594
    // Predicated region
    $region34: #{tpu_custom_call.1} parent=1 // pred_check
      _
    $region35: #{tpu_custom_call.1} parent=1 // pred_check_branch
      %601 = sbr.rel (0) target = $region37
    $region36: #{tpu_custom_call.1} parent=1 // pred_region
      %s603 = ssub.s32 256, 256
      %604 = vsyncadd [#allocation4], %s603
      %s606 = sshll.u32 [#allocation8], 4
      %s607 = int_to_ptr.vmem [resolvable:$true] %s606
      %609 = dma.vmem_to_hbm [thread:$0]  %s607, 256, %s5, [#allocation4]
    $region37: #{tpu_custom_call.1} parent=1 // pred_fallthru
      _
    // Predicated region
    $region38: #{tpu_custom_call.1} parent=1 // pred_check
      _
    $region39: #{tpu_custom_call.1} parent=1 // pred_check_branch
      %611 = sbr.rel (0) target = $region41
    $region40: #{tpu_custom_call.1} parent=1 // pred_region
      %612 = dma.done [#allocation4], 256
    $region41: #{tpu_custom_call.1} parent=1 // pred_fallthru
      _
    %613 = vsyncpa [#allocation3], 1
    %614 = vsyncpa [#allocation6], 1
    %615 = vsyncpa [#allocation4], 1

</llo_original>
